<compile_context>
chip_gen: v5e
topology: v5e:2x2
jax: 0.10.0
libtpu: 0.0.40
codegen_flags: <defaults>
</compile_context>

<pallas_src>
import functools

import jax
import jax.numpy as jnp
import numpy as np
from jax.experimental import pallas as pl
from jax.experimental.pallas import tpu as pltpu


def _round_up(a, b):
    return (a + b - 1) // b * b


def _pool_shifts(p):
    """Lane-offset tree-max schedule for a p x p window on the 8x8 spatial grid.

    Within one time slice the lane index is 8*h + w, so a shift of `d` pools
    along w and a shift of `8*d` pools along h.  log2(p) shifts per axis.
    """
    shifts = []
    d = 1
    while d < p:                 # pool along w: offsets 1, 2, ...
        shifts.append(d)
        d *= 2
    d = 1
    while d < p:                 # pool along h: offsets 8, 16, ...
        shifts.append(8 * d)
        d *= 2
    return tuple(shifts)


# ------------------------------ Pallas kernel ------------------------------ #
def _raw_feature_kernel(x_ref, w_ref, b_ref, o_ref, *, pool_shifts, negative_slope):
    # x_ref: (TILE_N, D) raw rows, D = T*64, lane = 64*t + 8*h + w (natural order)
    # w_ref: (D, F) compute-dtype weights, zero rows except at pooled-output lanes
    # b_ref: (1, F) f32 bias      o_ref: (TILE_N, F) f32
    v = x_ref[...]
    d_lanes = v.shape[-1]

    # MaxPool3d(kernel=[1, p, p]) on the natural layout: separable tree-max via
    # lane rotations.  pltpu.roll follows jnp.roll semantics, so a shift of
    # (D - s) brings lane (l + s) to lane l.  After the loop, lanes with
    # (h % p == 0, w % p == 0) hold the window max; all other lanes hold finite
    # junk that is multiplied by zero weight rows in the matmul below.
    for s in pool_shifts:
        v = jnp.maximum(v, pltpu.roll(v, d_lanes - s, axis=1))

    # Full-extent Conv3d == one GEMM per filter (MXU, bf16 operands, f32 acc).
    y = jnp.dot(v.astype(w_ref.dtype), w_ref[...],
                preferred_element_type=jnp.float32)
    y = y + b_ref[...]

    # Dropout3d: identity in eval mode.  LeakyReLU on the VPU.
    y = jnp.where(y >= 0, y, negative_slope * y)
    o_ref[...] = y.astype(o_ref.dtype)


# --------------------------------- wrapper ---------------------------------- #
def raw_feature_model_forward(x, conv_w, conv_b, *, maxpool_size, negative_slope,
                              tile_n=1024, compute_dtype=jnp.bfloat16):
    """Forward pass of RawFeatureModel.

    x:       (N, 1, T, 8, 8) float32 or bfloat16 (PyTorch NCDHW layout)
    conv_w:  (F, 1, T, 8//p, 8//p)
    conv_b:  (F,)
    Returns: (N, F) float32

    `compute_dtype` is the MXU operand dtype (bf16 default; jnp.float32 gives
    bit-faithful PyTorch numerics at 2x MXU cost — still far under roofline).
    """
    N, C, T, H, W = x.shape
    assert C == 1 and H == 8 and W == 8, "expected (N, 1, T, 8, 8) input"
    p = int(maxpool_size)
    assert p in (1, 2, 4), "mf_maxpool_size must be 1, 2 or 4"
    sd = 8 // p
    F = conv_w.shape[0]
    assert conv_w.shape == (F, 1, T, sd, sd)
    D = T * 64

    # ---- input: reshape only — no transpose, no dtype conversion HBM pass ----
    x2 = x.reshape(N, D)

    # ---- weights: scatter (F,T,sd,sd) onto the pooled-output lane positions --
    # w2[64*t + 8*(p*h_out) + p*w_out, f] = conv_w[f, 0, t, h_out, w_out];
    # all other rows are zero.  Tiny (D*F elements), done once on the host.
    w_sp = jnp.transpose(conv_w.reshape(F, T, sd, sd), (1, 2, 3, 0))   # (T,sd,sd,F)
    w_lanes = jnp.zeros((T, 8, 8, F), compute_dtype)
    w_lanes = w_lanes.at[:, ::p, ::p, :].set(w_sp.astype(compute_dtype))
    w2 = w_lanes.reshape(D, F)
    b2 = conv_b.reshape(1, F).astype(jnp.float32)

    # ---- batch tiling ---------------------------------------------------------
    tile = int(max(8, min(tile_n, _round_up(N, 8))))    # multiple of 8 sublanes
    n_pad = _round_up(N, tile)
    if n_pad != N:
        x2 = jnp.pad(x2, ((0, n_pad - N), (0, 0)))
    grid = (n_pad // tile,)

    kernel = functools.partial(
        _raw_feature_kernel,
        pool_shifts=_pool_shifts(p),
        negative_slope=float(negative_slope),
    )
    out = pl.pallas_call(
        kernel,
        out_shape=jax.ShapeDtypeStruct((n_pad, F), jnp.float32),
        grid=grid,
        in_specs=[
            pl.BlockSpec((tile, D), lambda i: (i, 0)),   # streamed / pipelined
            pl.BlockSpec((D, F), lambda i: (0, 0)),      # resident weights
            pl.BlockSpec((1, F), lambda i: (0, 0)),      # resident bias
        ],
        out_specs=pl.BlockSpec((tile, F), lambda i: (i, 0)),
        compiler_params=pltpu.CompilerParams(
            dimension_semantics=("parallel",),           # megacore on v7x
        ),
    )(x2, w2, b2)
    return out[:N]


# ----------------------------- pure-JAX reference ---------------------------- #
def _reference(x, conv_w, conv_b, *, maxpool_size, negative_slope, matmul_dtype=None):
    N, _, T, _, _ = x.shape
    p = maxpool_size
    sd = 8 // p
    F = conv_w.shape[0]
    pooled = x.reshape(N, T, sd, p, sd, p).max(axis=(3, 5)).reshape(N, -1)  # maxpool
    w = conv_w.reshape(F, -1).T
    if matmul_dtype is not None:
        pooled = pooled.astype(matmul_dtype)
        w = w.astype(matmul_dtype)
    y = jnp.dot(pooled, w, preferred_element_type=jnp.float32) + conv_b     # conv
    return jnp.where(y >= 0, y, negative_slope * y)                         # leaky relu


# ------------------------------------ main ----------------------------------- #
if __name__ == "__main__":
    signal_window_size = 8        # power of 2
    mf_negative_slope = 0.02
    raw_num_filters = 16

    key = jax.random.PRNGKey(0)

    configs = [
        # (mf_maxpool_size, batch, tile_n override)
        (1, 2, None),
        (2, 2, None),
        (4, 2, None),
        (2, 37, 16),              # exercises multi-step grid + batch padding
    ]
    for mf_maxpool_size, batch, tile_n in configs:
        key, kx, kw, kb = jax.random.split(key, 4)
        spatial_dim = 8 // mf_maxpool_size
        filter_size = (signal_window_size, spatial_dim, spatial_dim)

        # Input: (N, 1, signal_window_size, 8, 8)
        x = jax.random.normal(kx, (batch, 1, signal_window_size, 8, 8), jnp.float32)

        # Conv3d(1 -> F, kernel=filter_size): weight (F,1,T,sd,sd), bias (F,)
        fan_in = int(np.prod(filter_size))
        bound = float(1.0 / np.sqrt(fan_in))
        conv_w = jax.random.uniform(kw, (raw_num_filters, 1) + filter_size,
                                    jnp.float32, -bound, bound)
        conv_b = jax.random.uniform(kb, (raw_num_filters,), jnp.float32, -bound, bound)

        kwargs = {} if tile_n is None else {"tile_n": tile_n}
        out = raw_feature_model_forward(
            x, conv_w, conv_b,
            maxpool_size=mf_maxpool_size, negative_slope=mf_negative_slope, **kwargs)
        out = jax.block_until_ready(out)
        assert out.shape == (batch, raw_num_filters)

        # Tight check against a bf16-operand reference (same rounding as kernel).
        ref_bf16 = _reference(x, conv_w, conv_b,
                              maxpool_size=mf_maxpool_size,
                              negative_slope=mf_negative_slope,
                              matmul_dtype=jnp.bfloat16)
        np.testing.assert_allclose(np.asarray(out), np.asarray(ref_bf16),
                                   rtol=1e-3, atol=1e-3)

        # Fidelity check against the exact f32 PyTorch semantics
        # (loose tolerance accounts for bf16 MXU operands).
        ref_f32 = _reference(x, conv_w, conv_b,
                             maxpool_size=mf_maxpool_size,
                             negative_slope=mf_negative_slope)
        np.testing.assert_allclose(np.asarray(out), np.asarray(ref_f32),
                                   rtol=3e-2, atol=3e-2)

    print("KERNEL_OK")
</pallas_src>

<mosaic_0001>
module attributes {stable_mosaic.version = 11 : i64} {
  func.func @_raw_feature_kernel(%arg0: i32, %arg1: memref<8x512xf32, #tpu.memory_space<vmem>>, %arg2: memref<512x16xbf16, #tpu.memory_space<vmem>>, %arg3: memref<1x16xf32, #tpu.memory_space<vmem>>, %arg4: memref<8x16xf32, #tpu.memory_space<vmem>>) attributes {dimension_semantics = [#tpu.dimension_semantics<parallel>], iteration_bounds = array<i64: 1>, scalar_prefetch = 0 : i64, scratch_operands = 0 : i64, tpu.core_type = #tpu.core_type<tc>, window_params = [{transform_indices = @transform_0, window_bounds = array<i64: 8, 512>}, {pipeline_mode = #tpu.pipeline_mode<synchronous>, transform_indices = @transform_1, window_bounds = array<i64: 512, 16>}, {pipeline_mode = #tpu.pipeline_mode<synchronous>, transform_indices = @transform_2, window_bounds = array<i64: 1, 16>}, {transform_indices = @transform_3, window_bounds = array<i64: 8, 16>}]} {
    %c0 = arith.constant 0 : index
    %c0_0 = arith.constant 0 : index
    %0 = vector.load %arg1[%c0, %c0_0] : memref<8x512xf32, #tpu.memory_space<vmem>>, vector<8x512xf32>
    %1 = arith.truncf %0 : vector<8x512xf32> to vector<8x512xbf16>
    %c0_1 = arith.constant 0 : index
    %c0_2 = arith.constant 0 : index
    %2 = vector.load %arg2[%c0_1, %c0_2] : memref<512x16xbf16, #tpu.memory_space<vmem>>, vector<512x16xbf16>
    %cst = arith.constant dense<0.000000e+00> : vector<8x16xf32>
    %3 = tpu.matmul %1, %2, %cst {dimension_numbers = #tpu.dot_dimension_numbers<[1], [0], [0], [1], [0, 0, 1, 1], [], []>} : vector<8x512xbf16>, vector<512x16xbf16>, vector<8x16xf32> -> vector<8x16xf32>
    %c0_3 = arith.constant 0 : index
    %c0_4 = arith.constant 0 : index
    %4 = vector.load %arg3[%c0_3, %c0_4] : memref<1x16xf32, #tpu.memory_space<vmem>>, vector<1x16xf32>
    %5 = vector.broadcast %4 : vector<1x16xf32> to vector<8x16xf32>
    %6 = arith.addf %3, %5 : vector<8x16xf32>
    %cst_5 = arith.constant 0.000000e+00 : f32
    %7 = vector.broadcast %cst_5 : f32 to vector<8x16xf32>
    %8 = arith.cmpf oge, %6, %7 : vector<8x16xf32>
    %cst_6 = arith.constant 2.000000e-02 : f32
    %9 = vector.broadcast %cst_6 : f32 to vector<8x16xf32>
    %10 = arith.mulf %9, %6 : vector<8x16xf32>
    %11 = arith.select %8, %6, %10 : vector<8x16xi1>, vector<8x16xf32>
    %c0_7 = arith.constant 0 : index
    %c0_8 = arith.constant 0 : index
    %12 = vector.load %arg4[%c0_7, %c0_8] : memref<8x16xf32, #tpu.memory_space<vmem>>, vector<8x16xf32>
    tpu.vector_store %arg4[%c0_7, %c0_8], %11 {strides = array<i32>} : memref<8x16xf32, #tpu.memory_space<vmem>>, vector<8x16xf32>,
    return
  }
  func.func @transform_0(%arg0: i32) -> (i32, i32) {
    %c0_i32 = arith.constant 0 : i32
    %c0_i32_0 = arith.constant 0 : i32
    return %arg0, %c0_i32 : i32, i32
  }
  func.func @transform_1(%arg0: i32) -> (i32, i32) {
    %c0_i32 = arith.constant 0 : i32
    %c0_i32_0 = arith.constant 0 : i32
    %c0_i32_1 = arith.constant 0 : i32
    return %c0_i32, %c0_i32_0 : i32, i32
  }
  func.func @transform_2(%arg0: i32) -> (i32, i32) {
    %c0_i32 = arith.constant 0 : i32
    %c0_i32_0 = arith.constant 0 : i32
    %c0_i32_1 = arith.constant 0 : i32
    return %c0_i32, %c0_i32_0 : i32, i32
  }
  func.func @transform_3(%arg0: i32) -> (i32, i32) {
    %c0_i32 = arith.constant 0 : i32
    %c0_i32_0 = arith.constant 0 : i32
    return %arg0, %c0_i32 : i32, i32
  }
}

</mosaic_0001>

<llo_original>
// kernel: tpu_custom_call.1
$region0: #{tpu_custom_call.1}
  #allocation0 [shape = 'u32[]', space=smem, size = 0x4, offset = 0x4, fixed_abs, tag = 'smem constant byte address 0x4 - core index']
  #allocation1 [shape = 'u32[72,128]{1,0:T(1,128)}', space=vmem, size = 0x9000, scoped, tag = 'internal scratch']
  %s0 = inlined_call_operand.vmem [shape: f32[8,512], index: 0, kind: input, shape index: {}]
  %s1 = inlined_call_operand.vmem [shape: bf16[512,16], index: 1, kind: input, shape index: {}]
  %s2 = inlined_call_operand.vmem [shape: f32[1,16], index: 2, kind: input, shape index: {}]
  %s3 = inlined_call_operand.hbm [shape: f32[8,16], index: 3, kind: output, shape index: {}]
  %s4 = sld [smem:[#allocation0]]
  $region22: #{tpu_custom_call.1} parent=0
    _
  %s6 = ssub.s32 1, %s4
  %s7 = scalar_select 0, %s6, %s4
  $region1: #{tpu_custom_call.1} parent=0
    #allocation2 [shape = 'u8[4096]{0}', space=vmem, size = 0x1000, scoped, tag = 'output window, operand 0, single buffered']
    #allocation3 [shape = 's32[1]{0}', space=sflag, size = 0x4, scoped, tag = 'scoped memory for tpu_custom_call.1']
    %8 = vsyncpa [#allocation3], 0
    // Predicated region
    $region2: #{tpu_custom_call.1} parent=1 // pred_check
      _
    $region3: #{tpu_custom_call.1} parent=1 // pred_check_branch
      %10 = sbr.rel (0) target = $region5
    $region4: #{tpu_custom_call.1} parent=1 // pred_region
      _
    $region5: #{tpu_custom_call.1} parent=1 // pred_fallthru
      _
    // Predicated region
    $region6: #{tpu_custom_call.1} parent=1 // pred_check
      _
    $region7: #{tpu_custom_call.1} parent=1 // pred_check_branch
      %12 = sbr.rel (0) target = $region9
    $region8: #{tpu_custom_call.1} parent=1 // pred_region
      _
    $region9: #{tpu_custom_call.1} parent=1 // pred_fallthru
      _
    // Predicated region
    $region10: #{tpu_custom_call.1} parent=1 // pred_check
      _
    $region11: #{tpu_custom_call.1} parent=1 // pred_check_branch
      %14 = sbr.rel (0) target = $region13
    $region12: #{tpu_custom_call.1} parent=1 // pred_region
      _
    $region13: #{tpu_custom_call.1} parent=1 // pred_fallthru
      _
    %v15 = vld [vmem:[%s0] sm:$0xff]
    %v16 = vld [vmem:[%s0 + $0x8] sm:$0xff]
    %v17 = vld [vmem:[%s0 + $0x10] sm:$0xff]
    %v18 = vld [vmem:[%s0 + $0x18] sm:$0xff]
    %v19 = vpack.c.bf16 %v15, %v15
    %v20 = vpack.c.bf16 %v16, %v16
    %v21 = vpack.c.bf16 %v17, %v17
    %v22 = vpack.c.bf16 %v18, %v18
    %v23 = vld [vmem:[%s1] sm:$0xf]
    %v24 = vld [vmem:[%s1 + $0x4] sm:$0xf]
    %v25 = vld [vmem:[%s1 + $0x8] sm:$0xf]
    %v26 = vld [vmem:[%s1 + $0xc] sm:$0xf]
    %v27 = vld [vmem:[%s1 + $0x10] sm:$0xf]
    %v28 = vld [vmem:[%s1 + $0x14] sm:$0xf]
    %v29 = vld [vmem:[%s1 + $0x18] sm:$0xf]
    %v30 = vld [vmem:[%s1 + $0x1c] sm:$0xf]
    %v31 = vld [vmem:[%s1 + $0x20] sm:$0xf]
    %v32 = vld [vmem:[%s1 + $0x24] sm:$0xf]
    %v33 = vld [vmem:[%s1 + $0x28] sm:$0xf]
    %v34 = vld [vmem:[%s1 + $0x2c] sm:$0xf]
    %v35 = vld [vmem:[%s1 + $0x30] sm:$0xf]
    %v36 = vld [vmem:[%s1 + $0x34] sm:$0xf]
    %v37 = vld [vmem:[%s1 + $0x38] sm:$0xf]
    %v38 = vld [vmem:[%s1 + $0x3c] sm:$0xf]
    %v39 = vld [vmem:[%s1 + $0x40] sm:$0xf]
    %v40 = vld [vmem:[%s1 + $0x44] sm:$0xf]
    %v41 = vld [vmem:[%s1 + $0x48] sm:$0xf]
    %v42 = vld [vmem:[%s1 + $0x4c] sm:$0xf]
    %v43 = vld [vmem:[%s1 + $0x50] sm:$0xf]
    %v44 = vld [vmem:[%s1 + $0x54] sm:$0xf]
    %v45 = vld [vmem:[%s1 + $0x58] sm:$0xf]
    %v46 = vld [vmem:[%s1 + $0x5c] sm:$0xf]
    %v47 = vld [vmem:[%s1 + $0x60] sm:$0xf]
    %v48 = vld [vmem:[%s1 + $0x64] sm:$0xf]
    %v49 = vld [vmem:[%s1 + $0x68] sm:$0xf]
    %v50 = vld [vmem:[%s1 + $0x6c] sm:$0xf]
    %v51 = vld [vmem:[%s1 + $0x70] sm:$0xf]
    %v52 = vld [vmem:[%s1 + $0x74] sm:$0xf]
    %v53 = vld [vmem:[%s1 + $0x78] sm:$0xf]
    %v54 = vld [vmem:[%s1 + $0x7c] sm:$0xf]
    %v55 = vld [vmem:[%s1 + $0x80] sm:$0xf]
    %v56 = vld [vmem:[%s1 + $0x84] sm:$0xf]
    %v57 = vld [vmem:[%s1 + $0x88] sm:$0xf]
    %v58 = vld [vmem:[%s1 + $0x8c] sm:$0xf]
    %v59 = vld [vmem:[%s1 + $0x90] sm:$0xf]
    %v60 = vld [vmem:[%s1 + $0x94] sm:$0xf]
    %v61 = vld [vmem:[%s1 + $0x98] sm:$0xf]
    %v62 = vld [vmem:[%s1 + $0x9c] sm:$0xf]
    %v63 = vld [vmem:[%s1 + $0xa0] sm:$0xf]
    %v64 = vld [vmem:[%s1 + $0xa4] sm:$0xf]
    %v65 = vld [vmem:[%s1 + $0xa8] sm:$0xf]
    %v66 = vld [vmem:[%s1 + $0xac] sm:$0xf]
    %v67 = vld [vmem:[%s1 + $0xb0] sm:$0xf]
    %v68 = vld [vmem:[%s1 + $0xb4] sm:$0xf]
    %v69 = vld [vmem:[%s1 + $0xb8] sm:$0xf]
    %v70 = vld [vmem:[%s1 + $0xbc] sm:$0xf]
    %v71 = vld [vmem:[%s1 + $0xc0] sm:$0xf]
    %v72 = vld [vmem:[%s1 + $0xc4] sm:$0xf]
    %v73 = vld [vmem:[%s1 + $0xc8] sm:$0xf]
    %v74 = vld [vmem:[%s1 + $0xcc] sm:$0xf]
    %v75 = vld [vmem:[%s1 + $0xd0] sm:$0xf]
    %v76 = vld [vmem:[%s1 + $0xd4] sm:$0xf]
    %v77 = vld [vmem:[%s1 + $0xd8] sm:$0xf]
    %v78 = vld [vmem:[%s1 + $0xdc] sm:$0xf]
    %v79 = vld [vmem:[%s1 + $0xe0] sm:$0xf]
    %v80 = vld [vmem:[%s1 + $0xe4] sm:$0xf]
    %v81 = vld [vmem:[%s1 + $0xe8] sm:$0xf]
    %v82 = vld [vmem:[%s1 + $0xec] sm:$0xf]
    %v83 = vld [vmem:[%s1 + $0xf0] sm:$0xf]
    %v84 = vld [vmem:[%s1 + $0xf4] sm:$0xf]
    %v85 = vld [vmem:[%s1 + $0xf8] sm:$0xf]
    %v86 = vld [vmem:[%s1 + $0xfc] sm:$0xf]
    %v87 = vld [vmem:[%s2] sm:$0x1]
    %v89 = vperm.slane %v87, 0
    %v155 = vunpack.c.l.b16 %v23
    %v156 = vunpack.c.l.b16 %v24
    %v157 = vunpack.c.l.b16 %v25
    %v158 = vunpack.c.l.b16 %v26
    %v159 = vunpack.c.l.b16 %v27
    %v160 = vunpack.c.l.b16 %v28
    %v161 = vunpack.c.l.b16 %v29
    %v162 = vunpack.c.l.b16 %v30
    %v163 = vunpack.c.l.b16 %v31
    %v164 = vunpack.c.l.b16 %v32
    %v165 = vunpack.c.l.b16 %v33
    %v166 = vunpack.c.l.b16 %v34
    %v167 = vunpack.c.l.b16 %v35
    %v168 = vunpack.c.l.b16 %v36
    %v169 = vunpack.c.l.b16 %v37
    %v170 = vunpack.c.l.b16 %v38
    %v171 = vunpack.c.l.b16 %v39
    %v172 = vunpack.c.l.b16 %v40
    %v173 = vunpack.c.l.b16 %v41
    %v174 = vunpack.c.l.b16 %v42
    %v175 = vunpack.c.l.b16 %v43
    %v176 = vunpack.c.l.b16 %v44
    %v177 = vunpack.c.l.b16 %v45
    %v178 = vunpack.c.l.b16 %v46
    %v179 = vunpack.c.l.b16 %v47
    %v180 = vunpack.c.l.b16 %v48
    %v181 = vunpack.c.l.b16 %v49
    %v182 = vunpack.c.l.b16 %v50
    %v183 = vunpack.c.l.b16 %v51
    %v184 = vunpack.c.l.b16 %v52
    %v185 = vunpack.c.l.b16 %v53
    %v186 = vunpack.c.l.b16 %v54
    %v187 = vunpack.c.l.b16 %v55
    %v188 = vunpack.c.l.b16 %v56
    %v189 = vunpack.c.l.b16 %v57
    %v190 = vunpack.c.l.b16 %v58
    %v191 = vunpack.c.l.b16 %v59
    %v192 = vunpack.c.l.b16 %v60
    %v193 = vunpack.c.l.b16 %v61
    %v194 = vunpack.c.l.b16 %v62
    %v195 = vunpack.c.l.b16 %v63
    %v196 = vunpack.c.l.b16 %v64
    %v197 = vunpack.c.l.b16 %v65
    %v198 = vunpack.c.l.b16 %v66
    %v199 = vunpack.c.l.b16 %v67
    %v200 = vunpack.c.l.b16 %v68
    %v201 = vunpack.c.l.b16 %v69
    %v202 = vunpack.c.l.b16 %v70
    %v203 = vunpack.c.l.b16 %v71
    %v204 = vunpack.c.l.b16 %v72
    %v205 = vunpack.c.l.b16 %v73
    %v206 = vunpack.c.l.b16 %v74
    %v207 = vunpack.c.l.b16 %v75
    %v208 = vunpack.c.l.b16 %v76
    %v209 = vunpack.c.l.b16 %v77
    %v210 = vunpack.c.l.b16 %v78
    %v211 = vunpack.c.l.b16 %v79
    %v212 = vunpack.c.l.b16 %v80
    %v213 = vunpack.c.l.b16 %v81
    %v214 = vunpack.c.l.b16 %v82
    %v215 = vunpack.c.l.b16 %v83
    %v216 = vunpack.c.l.b16 %v84
    %v217 = vunpack.c.l.b16 %v85
    %v218 = vunpack.c.l.b16 %v86
    %v219 = vpack.c.b16 %v156, %v155
    %v220 = vpack.c.b16 %v158, %v157
    %v221 = vpack.c.b16 %v160, %v159
    %v222 = vpack.c.b16 %v162, %v161
    %v223 = vpack.c.b16 %v164, %v163
    %v224 = vpack.c.b16 %v166, %v165
    %v225 = vpack.c.b16 %v168, %v167
    %v226 = vpack.c.b16 %v170, %v169
    %v227 = vpack.c.b16 %v172, %v171
    %v228 = vpack.c.b16 %v174, %v173
    %v229 = vpack.c.b16 %v176, %v175
    %v230 = vpack.c.b16 %v178, %v177
    %v231 = vpack.c.b16 %v180, %v179
    %v232 = vpack.c.b16 %v182, %v181
    %v233 = vpack.c.b16 %v184, %v183
    %v234 = vpack.c.b16 %v186, %v185
    %v235 = vpack.c.b16 %v188, %v187
    %v236 = vpack.c.b16 %v190, %v189
    %v237 = vpack.c.b16 %v192, %v191
    %v238 = vpack.c.b16 %v194, %v193
    %v239 = vpack.c.b16 %v196, %v195
    %v240 = vpack.c.b16 %v198, %v197
    %v241 = vpack.c.b16 %v200, %v199
    %v242 = vpack.c.b16 %v202, %v201
    %v243 = vpack.c.b16 %v204, %v203
    %v244 = vpack.c.b16 %v206, %v205
    %v245 = vpack.c.b16 %v208, %v207
    %v246 = vpack.c.b16 %v210, %v209
    %v247 = vpack.c.b16 %v212, %v211
    %v248 = vpack.c.b16 %v214, %v213
    %v249 = vpack.c.b16 %v216, %v215
    %v250 = vpack.c.b16 %v218, %v217
    %283 = vmatpush.bf16.msra.mxu0 %v226
    %284 = vmatpush.bf16.msra.mxu0 %v225
    %285 = vmatpush.bf16.msra.mxu0 %v224
    %286 = vmatpush.bf16.msra.mxu0 %v223
    %287 = vmatpush.bf16.msra.mxu0 %v222
    %288 = vmatpush.bf16.msra.mxu0 %v221
    %289 = vmatpush.bf16.msra.mxu0 %v220
    %290 = vmatpush.bf16.msra.mxu0 %v219
    %291 = vmatmul.bf16.gmra.mxu0 %v19
    %v292 = vpop.f32.mrf.mxu0
    %v293 = vadd.f32 %v89, %v292
    %v294 = vpop.f32.mrf.mxu0
    %295 = vdwg.mxu0
    %296 = vmatpush.bf16.msra.mxu0 %v234
    %297 = vmatpush.bf16.msra.mxu0 %v233
    %298 = vmatpush.bf16.msra.mxu0 %v232
    %299 = vmatpush.bf16.msra.mxu0 %v231
    %300 = vmatpush.bf16.msra.mxu0 %v230
    %301 = vmatpush.bf16.msra.mxu0 %v229
    %302 = vmatpush.bf16.msra.mxu0 %v228
    %303 = vmatpush.bf16.msra.mxu0 %v227
    %304 = vmatmul.bf16.gmra.mxu0 %v20
    %v305 = vpop.f32.mrf.mxu0
    %v306 = vadd.f32 %v293, %v305
    %v307 = vpop.f32.mrf.mxu0
    %308 = vdwg.mxu0
    %309 = vmatpush.bf16.msra.mxu0 %v242
    %310 = vmatpush.bf16.msra.mxu0 %v241
    %311 = vmatpush.bf16.msra.mxu0 %v240
    %312 = vmatpush.bf16.msra.mxu0 %v239
    %313 = vmatpush.bf16.msra.mxu0 %v238
    %314 = vmatpush.bf16.msra.mxu0 %v237
    %315 = vmatpush.bf16.msra.mxu0 %v236
    %316 = vmatpush.bf16.msra.mxu0 %v235
    %317 = vmatmul.bf16.gmra.mxu0 %v21
    %v318 = vpop.f32.mrf.mxu0
    %v319 = vadd.f32 %v306, %v318
    %v320 = vpop.f32.mrf.mxu0
    %321 = vdwg.mxu0
    %322 = vmatpush.bf16.msra.mxu0 %v250
    %323 = vmatpush.bf16.msra.mxu0 %v249
    %324 = vmatpush.bf16.msra.mxu0 %v248
    %325 = vmatpush.bf16.msra.mxu0 %v247
    %326 = vmatpush.bf16.msra.mxu0 %v246
    %327 = vmatpush.bf16.msra.mxu0 %v245
    %328 = vmatpush.bf16.msra.mxu0 %v244
    %329 = vmatpush.bf16.msra.mxu0 %v243
    %330 = vmatmul.bf16.gmra.mxu0 %v22
    %v331 = vpop.f32.mrf.mxu0
    %v332 = vadd.f32 %v319, %v331
    %v333 = vpop.f32.mrf.mxu0
    %334 = vdwg.mxu0
    %vm335 = vcmp.ge.f32.partialorder %v332, 0.0
    %v336 = vmul.f32 %v332, 0.02
    %v337 = vsel %vm335, %v332, %v336
    %vm338 = vcmask 130048
    %339 = vst.msk [vmem:[#allocation2] sm:$0xff] %vm338, %v337
    // Predicated region
    $region14: #{tpu_custom_call.1} parent=1 // pred_check
      _
    $region15: #{tpu_custom_call.1} parent=1 // pred_check_branch
      %341 = sbr.rel (0) target = $region17
    $region16: #{tpu_custom_call.1} parent=1 // pred_region
      %343 = vsyncadd [#allocation3], 0
      %s345 = sshll.u32 [#allocation2], 4
      %s346 = int_to_ptr.vmem [resolvable:$true] %s345
      %s347 = sshll.u32 %s3, 4
      %s348 = int_to_ptr.hbm [resolvable:$true] %s347
      %350 = dma.vmem_to_hbm [thread:$0]  %s346, 128, %s348, [#allocation3]
    $region17: #{tpu_custom_call.1} parent=1 // pred_fallthru
      _
    // Predicated region
    $region18: #{tpu_custom_call.1} parent=1 // pred_check
      _
    $region19: #{tpu_custom_call.1} parent=1 // pred_check_branch
      %352 = sbr.rel (0) target = $region21
    $region20: #{tpu_custom_call.1} parent=1 // pred_region
      %354 = dma.done [#allocation3], 128
    $region21: #{tpu_custom_call.1} parent=1 // pred_fallthru
      _
    %355 = vsyncpa [#allocation3], 1

</llo_original>
